<compile_context>
chip_gen: v7x
topology: tpu7x:2x2x1
jax: 0.10.0
libtpu: 0.0.40
codegen_flags: <defaults>
</compile_context>

<pallas_src>
import functools

import jax
import jax.numpy as jnp
from jax.experimental import pallas as pl
from jax.experimental.pallas import tpu as pltpu

HALO = 128  # lane-aligned halo chunk loaded past each tile; must be >= K - 1


def simple_cnn_kernel(x_ref, wc_ref, cb_ref, w1_ref, b1_ref, w2_ref, b2_ref,
                      o_ref, *, tile_l, k_taps):
    # x_ref : (1, 1, W)  one full padded signal row (resident across time tiles)
    # wc_ref: (C, K)   conv weights        cb_ref: (C, 1) conv bias
    # w1_ref: (H, C)   linear1 weights^T   b1_ref: (H, 1)
    # w2_ref: (1, H)   linear2 weights^T   b2_ref: (1, 1)
    # o_ref : (1, 1, tile_l) lane-dense output tile
    t0 = pl.multiple_of(pl.program_id(1) * tile_l, 128)
    seg = x_ref[0, :, pl.ds(t0, tile_l + HALO)]               # (1, tile_l + HALO)

    # Build the K shifted taps: patches[k, t] = padded[t0 + t + k]  -> (K, T)
    patches = jnp.concatenate(
        [seg[:, k:k + tile_l] for k in range(k_taps)], axis=0)

    # Conv1d (cross-correlation) as weights-on-left matmul: (C,K)@(K,T)
    conv = jnp.dot(wc_ref[...], patches,
                   preferred_element_type=jnp.float32) + cb_ref[...]
    z1 = jnp.maximum(conv, 0.0)                               # (C, T)

    # Linear(C -> H) + ReLU: (H,C)@(C,T)
    h = jnp.dot(w1_ref[...], z1,
                preferred_element_type=jnp.float32) + b1_ref[...]
    h = jnp.maximum(h, 0.0)                                   # (H, T)

    # Linear(H -> 1): (1,H)@(H,T) -> lane-dense (1, T)
    out = jnp.dot(w2_ref[...], h,
                  preferred_element_type=jnp.float32) + b2_ref[...]
    o_ref[0, :, :] = out


def simple_cnn_forward(x, params, tile_l=512):
    """x: (B, 1, L) float32 (NCL, as torch Conv1d expects). Returns (B, L)."""
    conv_w, conv_b, w1, b1, w2, b2 = params
    B, c_in, L = x.shape
    assert c_in == 1
    C, K = conv_w.shape
    H = w1.shape[1]
    assert K - 1 <= HALO

    def round_up(a, m):
        return (a + m - 1) // m * m

    # Lane-aligned tile over the time axis; pad L up to a tile multiple.
    tile_l = round_up(min(tile_l, round_up(L, 128)), 128)
    l_pad = round_up(L, tile_l)
    num_tiles = l_pad // tile_l
    W = l_pad + HALO                                   # per-row padded width

    # Left-pad K-1 zeros (matches torch pad=K-1 followed by [:, :L] slice),
    # right-pad with zeros up to W so every in-kernel load is 128-aligned.
    xs = x[:, 0, :].astype(jnp.float32)                        # (B, L)
    xpad = jnp.pad(xs, ((0, 0), (K - 1, W - (K - 1) - L)))     # (B, W)
    xpad = xpad.reshape(B, 1, W)

    kernel = functools.partial(simple_cnn_kernel, tile_l=tile_l, k_taps=K)

    out = pl.pallas_call(
        kernel,
        out_shape=jax.ShapeDtypeStruct((B, 1, l_pad), jnp.float32),
        grid=(B, num_tiles),
        in_specs=[
            # One full signal row stays resident while its time tiles iterate.
            pl.BlockSpec((1, 1, W), lambda b, i: (b, 0, 0)),
            # Small weights/biases: constant blocks, DMA'd once, stay resident.
            pl.BlockSpec((C, K), lambda b, i: (0, 0)),
            pl.BlockSpec((C, 1), lambda b, i: (0, 0)),
            pl.BlockSpec((H, C), lambda b, i: (0, 0)),
            pl.BlockSpec((H, 1), lambda b, i: (0, 0)),
            pl.BlockSpec((1, H), lambda b, i: (0, 0)),
            pl.BlockSpec((1, 1), lambda b, i: (0, 0)),
        ],
        out_specs=pl.BlockSpec((1, 1, tile_l), lambda b, i: (b, 0, i)),
        compiler_params=pltpu.CompilerParams(
            dimension_semantics=("parallel", "parallel"),
            vmem_limit_bytes=32 * 1024 * 1024),
    )(
        xpad,
        conv_w,                      # (C, K)
        conv_b.reshape(C, 1),
        w1.T,                        # (H, C)
        b1.reshape(H, 1),
        w2.T,                        # (1, H)
        b2.reshape(1, 1),
    )
    return out.reshape(B, l_pad)[:, :L]


def init_params(key, num_kernels=3, mem_depth=5, hidden=32):
    """Deterministic torch-default-style (uniform +-1/sqrt(fan_in)) init."""
    ks = jax.random.split(key, 6)

    def u(k, shape, fan_in):
        bound = 1.0 / jnp.sqrt(jnp.float32(fan_in))
        return jax.random.uniform(k, shape, jnp.float32, -bound, bound)

    conv_w = u(ks[0], (num_kernels, mem_depth), 1 * mem_depth)   # (C, K)
    conv_b = u(ks[1], (num_kernels,), 1 * mem_depth)             # (C,)
    w1 = u(ks[2], (num_kernels, hidden), num_kernels)            # stored (in, out)
    b1 = u(ks[3], (hidden,), num_kernels)
    w2 = u(ks[4], (hidden, 1), hidden)                           # stored (in, out)
    b2 = u(ks[5], (1,), hidden)
    return conv_w, conv_b, w1, b1, w2, b2


def reference_forward(x, params):
    """Pure-JAX replica of the torch forward, for a sanity check."""
    conv_w, conv_b, w1, b1, w2, b2 = params
    B, _, L = x.shape
    C, K = conv_w.shape
    xpad = jnp.pad(x[:, 0, :], ((0, 0), (K - 1, K - 1)))         # torch pad=K-1 both sides
    Lc = L + K - 1
    conv = jnp.stack(
        [sum(conv_w[c, k] * xpad[:, k:k + Lc] for k in range(K)) + conv_b[c]
         for c in range(C)], axis=-1)                            # (B, Lc, C)
    z1 = jnp.maximum(conv, 0.0)
    z3 = jnp.maximum(z1 @ w1 + b1, 0.0)
    out = (z3 @ w2 + b2)[..., 0]                                 # (B, Lc)
    return out[:, :L]


if __name__ == "__main__":
    key = jax.random.PRNGKey(0)
    pkey, xkey = jax.random.split(key)

    params = init_params(pkey, num_kernels=3, mem_depth=5, hidden=32)

    B, L = 2, 16
    x = jax.random.normal(xkey, (B, 1, L), dtype=jnp.float32)    # NCL, 1 channel

    out = simple_cnn_forward(x, params)
    out = jax.block_until_ready(out)

    ref = reference_forward(x, params)
    assert out.shape == (B, L)
    assert jnp.allclose(out, ref, atol=1e-5, rtol=1e-5), "mismatch vs reference"

    print("KERNEL_OK")
</pallas_src>

<mosaic_0001>
module attributes {stable_mosaic.version = 11 : i64} {
  func.func @simple_cnn_kernel(%arg0: i32, %arg1: i32, %arg2: memref<1x1x256xf32, #tpu.memory_space<vmem>>, %arg3: memref<3x5xf32, #tpu.memory_space<vmem>>, %arg4: memref<3x1xf32, #tpu.memory_space<vmem>>, %arg5: memref<32x3xf32, #tpu.memory_space<vmem>>, %arg6: memref<32x1xf32, #tpu.memory_space<vmem>>, %arg7: memref<1x32xf32, #tpu.memory_space<vmem>>, %arg8: memref<1x1xf32, #tpu.memory_space<vmem>>, %arg9: memref<1x1x128xf32, #tpu.memory_space<vmem>>) attributes {dimension_semantics = [#tpu.dimension_semantics<parallel>, #tpu.dimension_semantics<parallel>], iteration_bounds = array<i64: 2, 1>, scalar_prefetch = 0 : i64, scratch_operands = 0 : i64, tpu.core_type = #tpu.core_type<tc>, window_params = [{transform_indices = @transform_0, window_bounds = array<i64: 1, 1, 256>}, {pipeline_mode = #tpu.pipeline_mode<synchronous>, transform_indices = @transform_1, window_bounds = array<i64: 3, 5>}, {pipeline_mode = #tpu.pipeline_mode<synchronous>, transform_indices = @transform_2, window_bounds = array<i64: 3, 1>}, {pipeline_mode = #tpu.pipeline_mode<synchronous>, transform_indices = @transform_3, window_bounds = array<i64: 32, 3>}, {pipeline_mode = #tpu.pipeline_mode<synchronous>, transform_indices = @transform_4, window_bounds = array<i64: 32, 1>}, {pipeline_mode = #tpu.pipeline_mode<synchronous>, transform_indices = @transform_5, window_bounds = array<i64: 1, 32>}, {pipeline_mode = #tpu.pipeline_mode<synchronous>, transform_indices = @transform_6, window_bounds = array<i64: 1, 1>}, {transform_indices = @transform_7, window_bounds = array<i64: 1, 1, 128>}]} {
    %c128_i32 = arith.constant 128 : i32
    %0 = arith.muli %arg1, %c128_i32 : i32
    %1 = tpu.assume_multiple %0, 128 : i32
    %c0 = arith.constant 0 : index
    %c0_0 = arith.constant 0 : index
    %2 = arith.index_cast %1 : i32 to index
    %3 = vector.load %arg2[%c0, %c0_0, %2] : memref<1x1x256xf32, #tpu.memory_space<vmem>>, vector<1x1x256xf32>
    %4 = vector.shape_cast %3 : vector<1x1x256xf32> to vector<1x256xf32>
    %5 = vector.extract_strided_slice %4 {offsets = [0, 0], sizes = [1, 128], strides = [1, 1]} : vector<1x256xf32> to vector<1x128xf32>
    %6 = vector.extract_strided_slice %4 {offsets = [0, 1], sizes = [1, 128], strides = [1, 1]} : vector<1x256xf32> to vector<1x128xf32>
    %7 = vector.extract_strided_slice %4 {offsets = [0, 2], sizes = [1, 128], strides = [1, 1]} : vector<1x256xf32> to vector<1x128xf32>
    %8 = vector.extract_strided_slice %4 {offsets = [0, 3], sizes = [1, 128], strides = [1, 1]} : vector<1x256xf32> to vector<1x128xf32>
    %9 = vector.extract_strided_slice %4 {offsets = [0, 4], sizes = [1, 128], strides = [1, 1]} : vector<1x256xf32> to vector<1x128xf32>
    %10 = tpu.concatenate %5, %6, %7, %8, %9 in 0 : vector<1x128xf32>, vector<1x128xf32>, vector<1x128xf32>, vector<1x128xf32>, vector<1x128xf32> -> vector<5x128xf32>
    %c0_1 = arith.constant 0 : index
    %c0_2 = arith.constant 0 : index
    %11 = vector.load %arg3[%c0_1, %c0_2] : memref<3x5xf32, #tpu.memory_space<vmem>>, vector<3x5xf32>
    %cst = arith.constant dense<0.000000e+00> : vector<3x128xf32>
    %12 = tpu.matmul %11, %10, %cst {dimension_numbers = #tpu.dot_dimension_numbers<[1], [0], [0], [1], [0, 0, 1, 1], [], []>} : vector<3x5xf32>, vector<5x128xf32>, vector<3x128xf32> -> vector<3x128xf32>
    %c0_3 = arith.constant 0 : index
    %c0_4 = arith.constant 0 : index
    %13 = vector.load %arg4[%c0_3, %c0_4] : memref<3x1xf32, #tpu.memory_space<vmem>>, vector<3x1xf32>
    %14 = vector.broadcast %13 : vector<3x1xf32> to vector<3x128xf32>
    %15 = arith.addf %12, %14 : vector<3x128xf32>
    %cst_5 = arith.constant 0.000000e+00 : f32
    %16 = vector.broadcast %cst_5 : f32 to vector<3x128xf32>
    %17 = arith.maximumf %15, %16 : vector<3x128xf32>
    %c0_6 = arith.constant 0 : index
    %c0_7 = arith.constant 0 : index
    %18 = vector.load %arg5[%c0_6, %c0_7] : memref<32x3xf32, #tpu.memory_space<vmem>>, vector<32x3xf32>
    %cst_8 = arith.constant dense<0.000000e+00> : vector<32x128xf32>
    %19 = tpu.matmul %18, %17, %cst_8 {dimension_numbers = #tpu.dot_dimension_numbers<[1], [0], [0], [1], [0, 0, 1, 1], [], []>} : vector<32x3xf32>, vector<3x128xf32>, vector<32x128xf32> -> vector<32x128xf32>
    %c0_9 = arith.constant 0 : index
    %c0_10 = arith.constant 0 : index
    %20 = vector.load %arg6[%c0_9, %c0_10] : memref<32x1xf32, #tpu.memory_space<vmem>>, vector<32x1xf32>
    %21 = vector.broadcast %20 : vector<32x1xf32> to vector<32x128xf32>
    %22 = arith.addf %19, %21 : vector<32x128xf32>
    %cst_11 = arith.constant 0.000000e+00 : f32
    %23 = vector.broadcast %cst_11 : f32 to vector<32x128xf32>
    %24 = arith.maximumf %22, %23 : vector<32x128xf32>
    %c0_12 = arith.constant 0 : index
    %c0_13 = arith.constant 0 : index
    %25 = vector.load %arg7[%c0_12, %c0_13] : memref<1x32xf32, #tpu.memory_space<vmem>>, vector<1x32xf32>
    %cst_14 = arith.constant dense<0.000000e+00> : vector<1x128xf32>
    %26 = tpu.matmul %25, %24, %cst_14 {dimension_numbers = #tpu.dot_dimension_numbers<[1], [0], [0], [1], [0, 0, 1, 1], [], []>} : vector<1x32xf32>, vector<32x128xf32>, vector<1x128xf32> -> vector<1x128xf32>
    %c0_15 = arith.constant 0 : index
    %c0_16 = arith.constant 0 : index
    %27 = vector.load %arg8[%c0_15, %c0_16] : memref<1x1xf32, #tpu.memory_space<vmem>>, vector<1x1xf32>
    %28 = vector.broadcast %27 : vector<1x1xf32> to vector<1x128xf32>
    %29 = arith.addf %26, %28 : vector<1x128xf32>
    %c0_17 = arith.constant 0 : index
    %c0_18 = arith.constant 0 : index
    %c0_19 = arith.constant 0 : index
    %30 = vector.load %arg9[%c0_17, %c0_18, %c0_19] : memref<1x1x128xf32, #tpu.memory_space<vmem>>, vector<1x1x128xf32>
    %31 = vector.shape_cast %30 : vector<1x1x128xf32> to vector<1x128xf32>
    %32 = vector.shape_cast %29 : vector<1x128xf32> to vector<1x1x128xf32>
    tpu.vector_store %arg9[%c0_17, %c0_18, %c0_19], %32 {strides = array<i32>} : memref<1x1x128xf32, #tpu.memory_space<vmem>>, vector<1x1x128xf32>,
    return
  }
  func.func @transform_0(%arg0: i32, %arg1: i32) -> (i32, i32, i32) {
    %c0_i32 = arith.constant 0 : i32
    %c0_i32_0 = arith.constant 0 : i32
    %c0_i32_1 = arith.constant 0 : i32
    return %arg0, %c0_i32, %c0_i32_0 : i32, i32, i32
  }
  func.func @transform_1(%arg0: i32, %arg1: i32) -> (i32, i32) {
    %c0_i32 = arith.constant 0 : i32
    %c0_i32_0 = arith.constant 0 : i32
    %c0_i32_1 = arith.constant 0 : i32
    return %c0_i32, %c0_i32_0 : i32, i32
  }
  func.func @transform_2(%arg0: i32, %arg1: i32) -> (i32, i32) {
    %c0_i32 = arith.constant 0 : i32
    %c0_i32_0 = arith.constant 0 : i32
    %c0_i32_1 = arith.constant 0 : i32
    return %c0_i32, %c0_i32_0 : i32, i32
  }
  func.func @transform_3(%arg0: i32, %arg1: i32) -> (i32, i32) {
    %c0_i32 = arith.constant 0 : i32
    %c0_i32_0 = arith.constant 0 : i32
    %c0_i32_1 = arith.constant 0 : i32
    return %c0_i32, %c0_i32_0 : i32, i32
  }
  func.func @transform_4(%arg0: i32, %arg1: i32) -> (i32, i32) {
    %c0_i32 = arith.constant 0 : i32
    %c0_i32_0 = arith.constant 0 : i32
    %c0_i32_1 = arith.constant 0 : i32
    return %c0_i32, %c0_i32_0 : i32, i32
  }
  func.func @transform_5(%arg0: i32, %arg1: i32) -> (i32, i32) {
    %c0_i32 = arith.constant 0 : i32
    %c0_i32_0 = arith.constant 0 : i32
    %c0_i32_1 = arith.constant 0 : i32
    return %c0_i32, %c0_i32_0 : i32, i32
  }
  func.func @transform_6(%arg0: i32, %arg1: i32) -> (i32, i32) {
    %c0_i32 = arith.constant 0 : i32
    %c0_i32_0 = arith.constant 0 : i32
    %c0_i32_1 = arith.constant 0 : i32
    return %c0_i32, %c0_i32_0 : i32, i32
  }
  func.func @transform_7(%arg0: i32, %arg1: i32) -> (i32, i32, i32) {
    %c0_i32 = arith.constant 0 : i32
    %c0_i32_0 = arith.constant 0 : i32
    return %arg0, %c0_i32, %arg1 : i32, i32, i32
  }
}

</mosaic_0001>

<llo_original>
// kernel: tpu_custom_call.1
$region0: #{tpu_custom_call.1}
  #allocation0 [shape = 'u32[]', space=smem, size = 0x4, offset = 0x4, fixed_abs, tag = 'smem constant byte address 0x4 - core index']
  #allocation1 [shape = 'u32[144,128]{1,0:T(1,128)}', space=vmem, size = 0x12000, scoped, tag = 'internal scratch']
  #allocation2 [shape = 'f32[1,1]{1,0:T(1,128)S(1)}', space=vmem, size = 0x200, scoped, tag = 'scoped memory for tpu_custom_call.1']
  %s0 = inlined_call_operand.vmem [shape: f32[2,1,256], index: 0, kind: input, shape index: {}]
  %s1 = inlined_call_operand.vmem [shape: f32[3,5], index: 1, kind: input, shape index: {}]
  %s2 = inlined_call_operand.vmem [shape: f32[3,1], index: 2, kind: input, shape index: {}]
  %s3 = inlined_call_operand.vmem [shape: f32[32,3], index: 3, kind: input, shape index: {}]
  %s4 = inlined_call_operand.vmem [shape: f32[32,1], index: 4, kind: input, shape index: {}]
  %s5 = inlined_call_operand.vmem [shape: f32[1,32], index: 5, kind: input, shape index: {}]
  %s6 = inlined_call_operand.<no memory space> [shape: f32[1,1], index: 6, kind: input, shape index: {}]
  %s7 = inlined_call_operand.hbm [shape: f32[2,1,128], index: 7, kind: output, shape index: {}]
  %s8 = sld [smem:[#allocation0]]
  $region61: #{tpu_custom_call.1} parent=0
    _
  %s10 = ssub.s32 1, %s8
  %s11 = scalar_select 0, %s10, %s8
  %v12 = vstv %s6
  %13 = vst [vmem:[#allocation2] sm:$0x1] %v12
  $region1: #{tpu_custom_call.1} parent=0
    #allocation3 [shape = 'u8[1024]{0}', space=vmem, size = 0x400, scoped, tag = 'output window, operand 0']
    #allocation4 [shape = 's32[2]{0}', space=sflag, size = 0x8, scoped, tag = 'scoped memory for tpu_custom_call.1']
    %14 = vsyncpa [#allocation4], 0
    %s15 = scalar_lea.sflag [#allocation4], 1
    %16 = vsyncpa %s15, 0
    loop: start=0, step=1, limit=4
    $region2: #{tpu_custom_call.1} parent=1 // loop_pre_header
      _
    $region3: #{tpu_custom_call.1} parent=1 // loop_header
      %s18 = sphi 0, %s22
      %p19 = scmp.ge.s32.totalorder %s18, 4
      %s25 = sphi 0, %s37
      %s26 = sphi 0, %s33
      %s27 = sphi 0, %s25
      %s28 = sphi 0, %s26
      %s29 = sphi 0, %s27
      %s30 = sphi 0, %s28
      %s40 = sphi 0, %s42
      %s43 = sphi 0, %s40
      %s44 = sphi 0, %s43
      %s60 = sphi 0, %s44
      %s64 = sphi 0, %s64
      %s66 = sphi 0, %s64
      %s67 = sphi 0, %s66
      %s81 = sphi 0, %s67
      %s85 = sphi 0, %s85
      %s87 = sphi 0, %s85
      %s88 = sphi 0, %s87
      %s102 = sphi 0, %s88
      %s106 = sphi 0, %s106
      %s108 = sphi 0, %s106
      %s109 = sphi 0, %s108
      %s123 = sphi 0, %s109
      %s127 = sphi 0, %s127
      %s129 = sphi 0, %s127
      %s130 = sphi 0, %s129
      %s144 = sphi 0, %s130
      %s148 = sphi 0, %s148
      %s150 = sphi 0, %s148
      %s151 = sphi 0, %s150
      %s165 = sphi 0, %s151
      %s169 = sphi 0, %s169
      %s171 = sphi 0, %s169
      %s172 = sphi 0, %s171
      %s186 = sphi 0, %s172
      %s194 = sphi 0, %s196
      %s197 = sphi 0, %s194
      %s198 = sphi 0, %s197
      %s214 = sphi 0, %s198
    $region4: #{tpu_custom_call.1} parent=1 // loop_header_branch
      %21 = sbr.rel (%p19) target = $region8
    $region5: #{tpu_custom_call.1} parent=1 // loop_body
      %s23 = ssub.s32 %s18, 1
      %s24 = ssub.s32 %s18, 2
      %s31 = sadd.s32 1, %s26
      %p32 = scmp.ge.s32.totalorder %s31, 1
      %s33 = scalar_select %p32, 0, %s31
      %s34 = sadd.s32 1, %s25
      %s35 = scalar_select %p32, %s34, %s25
      %p36 = scmp.ge.s32.totalorder %s35, 2
      %s37 = scalar_select %p36, 0, %s35
      %s38 = ssub.s32 %s25, %s37
      %p39 = scmp.eq.s32.totalorder %s38, 0
      %s41 = sadd.s32 %s40, 1
      %s42 = scalar_select %p39, %s40, %s41
      %p45 = pneg %p39
      %p46 = scmp.eq.s32.totalorder %s18, 1
      %p47 = por %p45, %p46
      %p48 = scmp.ne.s32.totalorder %s40, %s43
      %p49 = scmp.eq.s32.totalorder %s18, 0
      %p50 = por %p48, %p49
      %p51 = scmp.ne.s32.totalorder %s40, %s43
      %p52 = scmp.eq.s32.totalorder %s23, 1
      %p53 = por %p51, %p52
      %p54 = scmp.ne.s32.totalorder %s43, %s44
      %p55 = scmp.eq.s32.totalorder %s23, 0
      %p56 = por %p54, %p55
      %p57 = scmp.ne.s32.totalorder %s43, %s44
      %p58 = scmp.eq.s32.totalorder %s24, 1
      %p59 = por %p57, %p58
      %p61 = scmp.ne.s32.totalorder %s44, %s60
      %p62 = scmp.eq.s32.totalorder %s24, 0
      %p63 = por %p61, %p62
      %s65 = sadd.s32 %s64, 1
      %p68 = scmp.eq.s32.totalorder %s18, 1
      %p69 = scmp.ne.s32.totalorder %s64, %s66
      %p70 = scmp.eq.s32.totalorder %s18, 0
      %p71 = por %p69, %p70
      %p72 = scmp.ne.s32.totalorder %s64, %s66
      %p73 = scmp.eq.s32.totalorder %s23, 1
      %p74 = por %p72, %p73
      %p75 = scmp.ne.s32.totalorder %s66, %s67
      %p76 = scmp.eq.s32.totalorder %s23, 0
      %p77 = por %p75, %p76
      %p78 = scmp.ne.s32.totalorder %s66, %s67
      %p79 = scmp.eq.s32.totalorder %s24, 1
      %p80 = por %p78, %p79
      %p82 = scmp.ne.s32.totalorder %s67, %s81
      %p83 = scmp.eq.s32.totalorder %s24, 0
      %p84 = por %p82, %p83
      %s86 = sadd.s32 %s85, 1
      %p89 = scmp.eq.s32.totalorder %s18, 1
      %p90 = scmp.ne.s32.totalorder %s85, %s87
      %p91 = scmp.eq.s32.totalorder %s18, 0
      %p92 = por %p90, %p91
      %p93 = scmp.ne.s32.totalorder %s85, %s87
      %p94 = scmp.eq.s32.totalorder %s23, 1
      %p95 = por %p93, %p94
      %p96 = scmp.ne.s32.totalorder %s87, %s88
      %p97 = scmp.eq.s32.totalorder %s23, 0
      %p98 = por %p96, %p97
      %p99 = scmp.ne.s32.totalorder %s87, %s88
      %p100 = scmp.eq.s32.totalorder %s24, 1
      %p101 = por %p99, %p100
      %p103 = scmp.ne.s32.totalorder %s88, %s102
      %p104 = scmp.eq.s32.totalorder %s24, 0
      %p105 = por %p103, %p104
      %s107 = sadd.s32 %s106, 1
      %p110 = scmp.eq.s32.totalorder %s18, 1
      %p111 = scmp.ne.s32.totalorder %s106, %s108
      %p112 = scmp.eq.s32.totalorder %s18, 0
      %p113 = por %p111, %p112
      %p114 = scmp.ne.s32.totalorder %s106, %s108
      %p115 = scmp.eq.s32.totalorder %s23, 1
      %p116 = por %p114, %p115
      %p117 = scmp.ne.s32.totalorder %s108, %s109
      %p118 = scmp.eq.s32.totalorder %s23, 0
      %p119 = por %p117, %p118
      %p120 = scmp.ne.s32.totalorder %s108, %s109
      %p121 = scmp.eq.s32.totalorder %s24, 1
      %p122 = por %p120, %p121
      %p124 = scmp.ne.s32.totalorder %s109, %s123
      %p125 = scmp.eq.s32.totalorder %s24, 0
      %p126 = por %p124, %p125
      %s128 = sadd.s32 %s127, 1
      %p131 = scmp.eq.s32.totalorder %s18, 1
      %p132 = scmp.ne.s32.totalorder %s127, %s129
      %p133 = scmp.eq.s32.totalorder %s18, 0
      %p134 = por %p132, %p133
      %p135 = scmp.ne.s32.totalorder %s127, %s129
      %p136 = scmp.eq.s32.totalorder %s23, 1
      %p137 = por %p135, %p136
      %p138 = scmp.ne.s32.totalorder %s129, %s130
      %p139 = scmp.eq.s32.totalorder %s23, 0
      %p140 = por %p138, %p139
      %p141 = scmp.ne.s32.totalorder %s129, %s130
      %p142 = scmp.eq.s32.totalorder %s24, 1
      %p143 = por %p141, %p142
      %p145 = scmp.ne.s32.totalorder %s130, %s144
      %p146 = scmp.eq.s32.totalorder %s24, 0
      %p147 = por %p145, %p146
      %s149 = sadd.s32 %s148, 1
      %p152 = scmp.eq.s32.totalorder %s18, 1
      %p153 = scmp.ne.s32.totalorder %s148, %s150
      %p154 = scmp.eq.s32.totalorder %s18, 0
      %p155 = por %p153, %p154
      %p156 = scmp.ne.s32.totalorder %s148, %s150
      %p157 = scmp.eq.s32.totalorder %s23, 1
      %p158 = por %p156, %p157
      %p159 = scmp.ne.s32.totalorder %s150, %s151
      %p160 = scmp.eq.s32.totalorder %s23, 0
      %p161 = por %p159, %p160
      %p162 = scmp.ne.s32.totalorder %s150, %s151
      %p163 = scmp.eq.s32.totalorder %s24, 1
      %p164 = por %p162, %p163
      %p166 = scmp.ne.s32.totalorder %s151, %s165
      %p167 = scmp.eq.s32.totalorder %s24, 0
      %p168 = por %p166, %p167
      %s170 = sadd.s32 %s169, 1
      %p173 = scmp.eq.s32.totalorder %s18, 1
      %p174 = scmp.ne.s32.totalorder %s169, %s171
      %p175 = scmp.eq.s32.totalorder %s18, 0
      %p176 = por %p174, %p175
      %p177 = scmp.ne.s32.totalorder %s169, %s171
      %p178 = scmp.eq.s32.totalorder %s23, 1
      %p179 = por %p177, %p178
      %p180 = scmp.ne.s32.totalorder %s171, %s172
      %p181 = scmp.eq.s32.totalorder %s23, 0
      %p182 = por %p180, %p181
      %p183 = scmp.ne.s32.totalorder %s171, %s172
      %p184 = scmp.eq.s32.totalorder %s24, 1
      %p185 = por %p183, %p184
      %p187 = scmp.ne.s32.totalorder %s172, %s186
      %p188 = scmp.eq.s32.totalorder %s24, 0
      %p189 = por %p187, %p188
      %s190 = ssub.s32 %s25, %s37
      %s191 = ssub.s32 %s26, %s33
      %s192 = sor.u32 %s190, %s191
      %p193 = scmp.eq.s32.totalorder %s192, 0
      %s195 = sadd.s32 %s194, 1
      %s196 = scalar_select %p193, %s194, %s195
      %p199 = pneg %p193
      %p200 = scmp.eq.s32.totalorder %s18, 1
      %p201 = por %p199, %p200
      %p202 = scmp.ne.s32.totalorder %s194, %s197
      %p203 = scmp.eq.s32.totalorder %s18, 0
      %p204 = por %p202, %p203
      %p205 = scmp.ne.s32.totalorder %s194, %s197
      %p206 = scmp.eq.s32.totalorder %s23, 1
      %p207 = por %p205, %p206
      %p208 = scmp.ne.s32.totalorder %s197, %s198
      %p209 = scmp.eq.s32.totalorder %s23, 0
      %p210 = por %p208, %p209
      %p211 = scmp.ne.s32.totalorder %s197, %s198
      %p212 = scmp.eq.s32.totalorder %s24, 1
      %p213 = por %p211, %p212
      %p215 = scmp.ne.s32.totalorder %s198, %s214
      %p216 = scmp.eq.s32.totalorder %s24, 0
      %p217 = por %p215, %p216
      %p218 = scmp.le.s32.totalorder 1, %s18
      %p219 = scmp.lt.s32.totalorder %s18, 3
      %p220 = pnand %p218, %p219
      %p221 = pneg %p220
      // Predicated region
      $region9: #{tpu_custom_call.1} parent=5 // pred_check
        _
      $region10: #{tpu_custom_call.1} parent=5 // pred_check_branch
        %223 = sbr.rel (%p220) target = $region12
      $region11: #{tpu_custom_call.1} parent=5 // pred_region
        %s224 = ssub.s32 %s18, 1
        // Predicated region
        $region13: #{tpu_custom_call.1} parent=11 // pred_check
          %p225 = pneg %p77
        $region14: #{tpu_custom_call.1} parent=11 // pred_check_branch
          %227 = sbr.rel (%p225) target = $region16
        $region15: #{tpu_custom_call.1} parent=11 // pred_region
          _
        $region16: #{tpu_custom_call.1} parent=11 // pred_fallthru
          _
        // Predicated region
        $region17: #{tpu_custom_call.1} parent=11 // pred_check
          %p228 = pneg %p98
        $region18: #{tpu_custom_call.1} parent=11 // pred_check_branch
          %230 = sbr.rel (%p228) target = $region20
        $region19: #{tpu_custom_call.1} parent=11 // pred_region
          _
        $region20: #{tpu_custom_call.1} parent=11 // pred_fallthru
          _
        // Predicated region
        $region21: #{tpu_custom_call.1} parent=11 // pred_check
          %p231 = pneg %p119
        $region22: #{tpu_custom_call.1} parent=11 // pred_check_branch
          %233 = sbr.rel (%p231) target = $region24
        $region23: #{tpu_custom_call.1} parent=11 // pred_region
          _
        $region24: #{tpu_custom_call.1} parent=11 // pred_fallthru
          _
        // Predicated region
        $region25: #{tpu_custom_call.1} parent=11 // pred_check
          %p234 = pneg %p140
        $region26: #{tpu_custom_call.1} parent=11 // pred_check_branch
          %236 = sbr.rel (%p234) target = $region28
        $region27: #{tpu_custom_call.1} parent=11 // pred_region
          _
        $region28: #{tpu_custom_call.1} parent=11 // pred_fallthru
          _
        // Predicated region
        $region29: #{tpu_custom_call.1} parent=11 // pred_check
          %p237 = pneg %p161
        $region30: #{tpu_custom_call.1} parent=11 // pred_check_branch
          %239 = sbr.rel (%p237) target = $region32
        $region31: #{tpu_custom_call.1} parent=11 // pred_region
          _
        $region32: #{tpu_custom_call.1} parent=11 // pred_fallthru
          _
        // Predicated region
        $region33: #{tpu_custom_call.1} parent=11 // pred_check
          %p240 = pneg %p182
        $region34: #{tpu_custom_call.1} parent=11 // pred_check_branch
          %242 = sbr.rel (%p240) target = $region36
        $region35: #{tpu_custom_call.1} parent=11 // pred_region
          _
        $region36: #{tpu_custom_call.1} parent=11 // pred_fallthru
          _
      $region12: #{tpu_custom_call.1} parent=5 // pred_fallthru
        _
      %p243 = scmp.lt.s32.totalorder %s18, 2
      // Predicated region
      $region37: #{tpu_custom_call.1} parent=5 // pred_check
        %p244 = pneg %p243
      $region38: #{tpu_custom_call.1} parent=5 // pred_check_branch
        %246 = sbr.rel (%p244) target = $region40
      $region39: #{tpu_custom_call.1} parent=5 // pred_region
        // Predicated region
        $region41: #{tpu_custom_call.1} parent=39 // pred_check
          %p247 = pneg %p50
        $region42: #{tpu_custom_call.1} parent=39 // pred_check_branch
          %249 = sbr.rel (%p247) target = $region44
        $region43: #{tpu_custom_call.1} parent=39 // pred_region
          %p250 = scmp.lt.s32.totalorder %s25, 1
          %s251 = scalar_select %p250, %s25, 1
          %s252 = smul.addr %s251, 2
          %s253 = scalar_lea.vmem %s0, %s252
        $region44: #{tpu_custom_call.1} parent=39 // pred_fallthru
          _
      $region40: #{tpu_custom_call.1} parent=5 // pred_fallthru
        _
      %p254 = scmp.le.s32.totalorder 1, %s18
      %p255 = scmp.lt.s32.totalorder %s18, 3
      %p256 = pnand %p254, %p255
      %p257 = pneg %p256
      // Predicated region
      $region45: #{tpu_custom_call.1} parent=5 // pred_check
        _
      $region46: #{tpu_custom_call.1} parent=5 // pred_check_branch
        %259 = sbr.rel (%p256) target = $region48
      $region47: #{tpu_custom_call.1} parent=5 // pred_region
        %s260 = ssub.s32 %s18, 1
        %p261 = scmp.lt.s32.totalorder %s27, 1
        %s262 = scalar_select %p261, %s27, 1
        %s263 = smul.addr %s262, 2
        %s264 = scalar_lea.vmem %s0, %s263
        %p265 = pneg %p56
        %p266 = pneg %p53
        %p267 = pneg %p77
        %p268 = pneg %p74
        %p269 = pneg %p98
        %p270 = pneg %p95
        %p271 = pneg %p119
        %p272 = pneg %p116
        %p273 = pneg %p140
        %p274 = pneg %p137
        %p275 = pneg %p161
        %p276 = pneg %p158
        %p277 = pneg %p182
        %p278 = pneg %p179
        %p279 = pneg %p210
        %p280 = pneg %p207
        %s281 = sand.u32 %s197, 1
        %s282 = scalar_lea.sflag [#allocation4], %s281
        %s283 = sand.u32 %s197, 1
        %s284 = scalar_lea.vmem [#allocation3], %s283
        %p285 = scmp.lt.s32.totalorder %s27, 1
        %s286 = scalar_select %p285, %s27, 1
        %s287 = smul.addr %s286, 2
        %s288 = scalar_lea.vmem %s0, %s287
        %s289 = smul.u32 %s28, 128
        %s290 = sshra.s32 %s289, 7
        %s291 = sand.u32 %s289, 127
        %s292 = scalar_lea.vmem %s288, %s290
        %v293 = vld [vmem:[%s292] sm:$0x3]
        %v295 = vlaneseq
        %v296 = vshrl.u32 %v295, 7
        %v297 = vsub.s32 0, %v296
        %v298 = vrot.slane %v293, %v297
        %v299 = vlaneseq
        %v300 = vshrl.u32 %v299, 7
        %v301 = vsub.s32 1, %v300
        %v302 = vrot.slane %v293, %v301
        %303 = vrot.lane.b32.xlu0 %v298, 127
        %v304 = vpop.permute.xlu0 %303
        %305 = vrot.lane.b32.xlu0 %v302, 127
        %v306 = vpop.permute.xlu0 %305
        %vm307 = vcmask 1039360
        %v308 = vsel %vm307, %v304, %v306
        %310 = vrot.lane.b32.xlu0 %v298, 126
        %v311 = vpop.permute.xlu0 %310
        %312 = vrot.lane.b32.xlu0 %v302, 126
        %v313 = vpop.permute.xlu0 %312
        %vm314 = vcmask 1031168
        %v315 = vsel %vm314, %v311, %v313
        %317 = vrot.lane.b32.xlu0 %v298, 125
        %v318 = vpop.permute.xlu0 %317
        %319 = vrot.lane.b32.xlu0 %v302, 125
        %v320 = vpop.permute.xlu0 %319
        %vm321 = vcmask 1022976
        %v322 = vsel %vm321, %v318, %v320
        %324 = vrot.lane.b32.xlu0 %v298, 124
        %v325 = vpop.permute.xlu0 %324
        %326 = vrot.lane.b32.xlu0 %v302, 124
        %v327 = vpop.permute.xlu0 %326
        %vm328 = vcmask 1014784
        %v329 = vsel %vm328, %v325, %v327
        %vm331 = vcmask 1040384
        %v332 = vsel %vm331, %v293, %v308
        %vm333 = vcmask 1041408
        %v334 = vsel %vm333, %v332, %v315
        %vm335 = vcmask 1042432
        %v336 = vsel %vm335, %v334, %v322
        %vm337 = vcmask 1043456
        %v338 = vsel %vm337, %v336, %v329
        %v339 = vld [vmem:[%s1] sm:$0x7]
        %v340 = vld [vmem:[%s2] sm:$0x7]
        %342 = vset.pattern.permute.xlu0 0
        %343 = vperm.xlu0 %342, %v340
        %v344 = vpop.permute.xlu0 %343
        %vm346 = vcmask 39936
        %v348 = vsel %vm346, %v339, 0
        %vm350 = vcmask 1044480
        %v352 = vsel %vm350, %v338, 0
        %354 = vmatprep.subr.mxu0 0.0
        %355 = vmatpush1.msra.mxu0 %v352
        %356 = vmatprep.subr.mxu0 0.0
        %357 = vmatpush1.msra.mxu0 0.0
        %358 = vmatprep.subr.mxu0 0.0
        %359 = vmatpush1.msra.mxu0 0.0
        %360 = vmatprep.subr.mxu0 0.0
        %361 = vmatpush1.msra.mxu0 0.0
        %362 = vmatprep.subr.mxu0 0.0
        %363 = vmatpush1.msra.mxu0 0.0
        %364 = vmatprep.subr.mxu0 0.0
        %365 = vmatpush1.msra.mxu0 0.0
        %366 = vmatprep.subr.mxu0 0.0
        %367 = vmatpush1.msra.mxu0 0.0
        %368 = vmatprep.subr.mxu0 0.0
        %369 = vmatpush1.msra.mxu0 0.0
        %370 = vmatprep.subr.mxu0 0.0
        %371 = vmatpush1.msra.mxu0 0.0
        %372 = vmatprep.subr.mxu0 0.0
        %373 = vmatpush1.msra.mxu0 0.0
        %374 = vmatprep.subr.mxu0 0.0
        %375 = vmatpush1.msra.mxu0 0.0
        %376 = vmatprep.subr.mxu0 0.0
        %377 = vmatpush1.msra.mxu0 0.0
        %378 = vmatprep.subr.mxu0 0.0
        %379 = vmatpush1.msra.mxu0 0.0
        %380 = vmatprep.subr.mxu0 0.0
        %381 = vmatpush1.msra.mxu0 0.0
        %382 = vmatprep.subr.mxu0 0.0
        %383 = vmatpush1.msra.mxu0 0.0
        %384 = vmatprep.subr.mxu0 0.0
        %385 = vmatpush1.msra.mxu0 0.0
        %386 = vmatprep.subr.mxu0 0.0
        %387 = vmatpush1.msra.mxu0 0.0
        %388 = vmatprep.subr.mxu0 0.0
        %389 = vmatpush1.msra.mxu0 0.0
        %390 = vmatprep.subr.mxu0 0.0
        %391 = vmatpush1.msra.mxu0 0.0
        %392 = vmatprep.subr.mxu0 0.0
        %393 = vmatpush1.msra.mxu0 0.0
        %394 = vmatprep.subr.mxu0 0.0
        %395 = vmatpush1.msra.mxu0 0.0
        %396 = vmatprep.subr.mxu0 0.0
        %397 = vmatpush1.msra.mxu0 0.0
        %398 = vmatprep.subr.mxu0 0.0
        %399 = vmatpush1.msra.mxu0 0.0
        %400 = vmatprep.subr.mxu0 0.0
        %401 = vmatpush1.msra.mxu0 0.0
        %402 = vmatprep.subr.mxu0 0.0
        %403 = vmatpush1.msra.mxu0 0.0
        %404 = vmatprep.subr.mxu0 0.0
        %405 = vmatpush1.msra.mxu0 0.0
        %406 = vmatprep.subr.mxu0 0.0
        %407 = vmatpush1.msra.mxu0 0.0
        %408 = vmatprep.subr.mxu0 0.0
        %409 = vmatpush1.msra.mxu0 0.0
        %410 = vmatprep.subr.mxu0 0.0
        %411 = vmatpush1.msra.mxu0 0.0
        %412 = vmatprep.subr.mxu0 0.0
        %413 = vmatpush1.msra.mxu0 0.0
        %414 = vmatprep.subr.mxu0 0.0
        %415 = vmatpush1.msra.mxu0 0.0
        %416 = vmatprep.subr.mxu0 0.0
        %417 = vmatpush1.msra.mxu0 0.0
        %418 = vmatprep.mubr.f32.mxu0 0.0
        %419 = vmatmul.mubr.f32.gmra.mrb[0].mxu0 %v348
        %v420 = vpop.f32.mrb[0].mxu0
        %v421 = vadd.f32 %v344, %v420
        %v422 = vpop.f32.mrb[0].mxu0
        %423 = vdwg.mxu0
        %v424 = vmax.f32 %v421, 0.0
        %v425 = vld [vmem:[%s3] sm:$0xff]
        %v426 = vld [vmem:[%s3 + $0x8] sm:$0xff]
        %v427 = vld [vmem:[%s3 + $0x10] sm:$0xff]
        %v428 = vld [vmem:[%s3 + $0x18] sm:$0xff]
        %v429 = vld [vmem:[%s4] sm:$0xff]
        %v430 = vld [vmem:[%s4 + $0x8] sm:$0xff]
        %v431 = vld [vmem:[%s4 + $0x10] sm:$0xff]
        %v432 = vld [vmem:[%s4 + $0x18] sm:$0xff]
        %434 = vset.pattern.permute.xlu0 0
        %435 = vperm.xlu0 %434, %v429
        %v436 = vpop.permute.xlu0 %435
        %439 = vset.pattern.permute.xlu0 0
        %440 = vperm.xlu0 %439, %v430
        %v441 = vpop.permute.xlu0 %440
        %444 = vset.pattern.permute.xlu0 0
        %445 = vperm.xlu0 %444, %v431
        %v446 = vpop.permute.xlu0 %445
        %449 = vset.pattern.permute.xlu0 0
        %450 = vperm.xlu0 %449, %v432
        %v451 = vpop.permute.xlu0 %450
        %vm453 = vcmask 23552
        %v455 = vsel %vm453, %v425, 0
        %v458 = vsel %vm453, %v426, 0
        %v461 = vsel %vm453, %v427, 0
        %v464 = vsel %vm453, %v428, 0
        %v467 = vsel %vm335, %v424, 0
        %469 = vmatprep.subr.mxu0 0.0
        %470 = vmatpush1.msra.mxu0 %v467
        %471 = vmatprep.subr.mxu0 0.0
        %472 = vmatpush1.msra.mxu0 0.0
        %473 = vmatprep.subr.mxu0 0.0
        %474 = vmatpush1.msra.mxu0 0.0
        %475 = vmatprep.subr.mxu0 0.0
        %476 = vmatpush1.msra.mxu0 0.0
        %477 = vmatprep.subr.mxu0 0.0
        %478 = vmatpush1.msra.mxu0 0.0
        %479 = vmatprep.subr.mxu0 0.0
        %480 = vmatpush1.msra.mxu0 0.0
        %481 = vmatprep.subr.mxu0 0.0
        %482 = vmatpush1.msra.mxu0 0.0
        %483 = vmatprep.subr.mxu0 0.0
        %484 = vmatpush1.msra.mxu0 0.0
        %485 = vmatprep.subr.mxu0 0.0
        %486 = vmatpush1.msra.mxu0 0.0
        %487 = vmatprep.subr.mxu0 0.0
        %488 = vmatpush1.msra.mxu0 0.0
        %489 = vmatprep.subr.mxu0 0.0
        %490 = vmatpush1.msra.mxu0 0.0
        %491 = vmatprep.subr.mxu0 0.0
        %492 = vmatpush1.msra.mxu0 0.0
        %493 = vmatprep.subr.mxu0 0.0
        %494 = vmatpush1.msra.mxu0 0.0
        %495 = vmatprep.subr.mxu0 0.0
        %496 = vmatpush1.msra.mxu0 0.0
        %497 = vmatprep.subr.mxu0 0.0
        %498 = vmatpush1.msra.mxu0 0.0
        %499 = vmatprep.subr.mxu0 0.0
        %500 = vmatpush1.msra.mxu0 0.0
        %501 = vmatprep.subr.mxu0 0.0
        %502 = vmatpush1.msra.mxu0 0.0
        %503 = vmatprep.subr.mxu0 0.0
        %504 = vmatpush1.msra.mxu0 0.0
        %505 = vmatprep.subr.mxu0 0.0
        %506 = vmatpush1.msra.mxu0 0.0
        %507 = vmatprep.subr.mxu0 0.0
        %508 = vmatpush1.msra.mxu0 0.0
        %509 = vmatprep.subr.mxu0 0.0
        %510 = vmatpush1.msra.mxu0 0.0
        %511 = vmatprep.subr.mxu0 0.0
        %512 = vmatpush1.msra.mxu0 0.0
        %513 = vmatprep.subr.mxu0 0.0
        %514 = vmatpush1.msra.mxu0 0.0
        %515 = vmatprep.subr.mxu0 0.0
        %516 = vmatpush1.msra.mxu0 0.0
        %517 = vmatprep.subr.mxu0 0.0
        %518 = vmatpush1.msra.mxu0 0.0
        %519 = vmatprep.subr.mxu0 0.0
        %520 = vmatpush1.msra.mxu0 0.0
        %521 = vmatprep.subr.mxu0 0.0
        %522 = vmatpush1.msra.mxu0 0.0
        %523 = vmatprep.subr.mxu0 0.0
        %524 = vmatpush1.msra.mxu0 0.0
        %525 = vmatprep.subr.mxu0 0.0
        %526 = vmatpush1.msra.mxu0 0.0
        %527 = vmatprep.subr.mxu0 0.0
        %528 = vmatpush1.msra.mxu0 0.0
        %529 = vmatprep.subr.mxu0 0.0
        %530 = vmatpush1.msra.mxu0 0.0
        %531 = vmatprep.subr.mxu0 0.0
        %532 = vmatpush1.msra.mxu0 0.0
        %533 = vmatprep.mubr.f32.mxu0 0.0
        %534 = vmatmul.mubr.f32.gmra.mrb[0].mxu0 %v455
        %v535 = vpop.f32.mrb[0].mxu0
        %v536 = vadd.f32 %v436, %v535
        %v537 = vpop.f32.mrb[0].mxu0
        %538 = vmatprep.mubr.f32.mxu0 0.0
        %539 = vmatmul.mubr.f32.gmra.mrb[0].mxu0 %v458
        %v540 = vpop.f32.mrb[0].mxu0
        %v541 = vadd.f32 %v441, %v540
        %v542 = vpop.f32.mrb[0].mxu0
        %543 = vmatprep.mubr.f32.mxu0 0.0
        %544 = vmatmul.mubr.f32.gmra.mrb[0].mxu0 %v461
        %v545 = vpop.f32.mrb[0].mxu0
        %v546 = vadd.f32 %v446, %v545
        %v547 = vpop.f32.mrb[0].mxu0
        %548 = vmatprep.mubr.f32.mxu0 0.0
        %549 = vmatmul.mubr.f32.gmra.mrb[0].mxu0 %v464
        %v550 = vpop.f32.mrb[0].mxu0
        %v551 = vadd.f32 %v451, %v550
        %v552 = vpop.f32.mrb[0].mxu0
        %553 = vdwg.mxu0
        %v554 = vmax.f32 %v536, 0.0
        %v555 = vmax.f32 %v541, 0.0
        %v556 = vmax.f32 %v546, 0.0
        %v557 = vmax.f32 %v551, 0.0
        %v558 = vld [vmem:[%s5] sm:$0x1]
        %v559 = vld [vmem:[#allocation2] sm:$0x1]
        %561 = vset.pattern.permute.xlu0 0
        %562 = vperm.xlu0 %561, %v559
        %v563 = vpop.permute.xlu0 %562
        %v565 = vlaneseq
        %v566 = vshrl.u32 %v565, 7
        %v567 = vsub.s32 0, %v566
        %v568 = vrot.slane %v563, %v567
        %vm569 = vcmask 261120
        %v571 = vsel %vm569, %v558, 0
        %573 = vmatprep.subr.mxu0 0.0
        %574 = vmatpush1.msra.mxu0 %v554
        %575 = vmatprep.subr.mxu0 0.0
        %576 = vmatpush1.msra.mxu0 %v555
        %577 = vmatprep.subr.mxu0 0.0
        %578 = vmatpush1.msra.mxu0 %v556
        %579 = vmatprep.subr.mxu0 0.0
        %580 = vmatpush1.msra.mxu0 %v557
        %581 = vmatprep.subr.mxu0 0.0
        %582 = vmatpush1.msra.mxu0 0.0
        %583 = vmatprep.subr.mxu0 0.0
        %584 = vmatpush1.msra.mxu0 0.0
        %585 = vmatprep.subr.mxu0 0.0
        %586 = vmatpush1.msra.mxu0 0.0
        %587 = vmatprep.subr.mxu0 0.0
        %588 = vmatpush1.msra.mxu0 0.0
        %589 = vmatprep.subr.mxu0 0.0
        %590 = vmatpush1.msra.mxu0 0.0
        %591 = vmatprep.subr.mxu0 0.0
        %592 = vmatpush1.msra.mxu0 0.0
        %593 = vmatprep.subr.mxu0 0.0
        %594 = vmatpush1.msra.mxu0 0.0
        %595 = vmatprep.subr.mxu0 0.0
        %596 = vmatpush1.msra.mxu0 0.0
        %597 = vmatprep.subr.mxu0 0.0
        %598 = vmatpush1.msra.mxu0 0.0
        %599 = vmatprep.subr.mxu0 0.0
        %600 = vmatpush1.msra.mxu0 0.0
        %601 = vmatprep.subr.mxu0 0.0
        %602 = vmatpush1.msra.mxu0 0.0
        %603 = vmatprep.subr.mxu0 0.0
        %604 = vmatpush1.msra.mxu0 0.0
        %605 = vmatprep.subr.mxu0 0.0
        %606 = vmatpush1.msra.mxu0 0.0
        %607 = vmatprep.subr.mxu0 0.0
        %608 = vmatpush1.msra.mxu0 0.0
        %609 = vmatprep.subr.mxu0 0.0
        %610 = vmatpush1.msra.mxu0 0.0
        %611 = vmatprep.subr.mxu0 0.0
        %612 = vmatpush1.msra.mxu0 0.0
        %613 = vmatprep.subr.mxu0 0.0
        %614 = vmatpush1.msra.mxu0 0.0
        %615 = vmatprep.subr.mxu0 0.0
        %616 = vmatpush1.msra.mxu0 0.0
        %617 = vmatprep.subr.mxu0 0.0
        %618 = vmatpush1.msra.mxu0 0.0
        %619 = vmatprep.subr.mxu0 0.0
        %620 = vmatpush1.msra.mxu0 0.0
        %621 = vmatprep.subr.mxu0 0.0
        %622 = vmatpush1.msra.mxu0 0.0
        %623 = vmatprep.subr.mxu0 0.0
        %624 = vmatpush1.msra.mxu0 0.0
        %625 = vmatprep.subr.mxu0 0.0
        %626 = vmatpush1.msra.mxu0 0.0
        %627 = vmatprep.subr.mxu0 0.0
        %628 = vmatpush1.msra.mxu0 0.0
        %629 = vmatprep.subr.mxu0 0.0
        %630 = vmatpush1.msra.mxu0 0.0
        %631 = vmatprep.subr.mxu0 0.0
        %632 = vmatpush1.msra.mxu0 0.0
        %633 = vmatprep.subr.mxu0 0.0
        %634 = vmatpush1.msra.mxu0 0.0
        %635 = vmatprep.subr.mxu0 0.0
        %636 = vmatpush1.msra.mxu0 0.0
        %637 = vmatprep.mubr.f32.mxu0 0.0
        %638 = vmatmul.mubr.f32.gmra.mrb[0].mxu0 %v571
        %v639 = vpop.f32.mrb[0].mxu0
        %v640 = vadd.f32 %v568, %v639
        %v641 = vpop.f32.mrb[0].mxu0
        %642 = vdwg.mxu0
        %643 = vst [vmem:[%s284] sm:$0x1] %v640
        %s644 = sand.u32 %s197, 1
        %s645 = scalar_lea.sflag [#allocation4], %s644
        %s646 = sand.u32 %s197, 1
        %s647 = scalar_lea.vmem [#allocation3], %s646
        // Predicated region
        $region49: #{tpu_custom_call.1} parent=47 // pred_check
          %p648 = pneg %p207
        $region50: #{tpu_custom_call.1} parent=47 // pred_check_branch
          %650 = sbr.rel (%p648) target = $region52
        $region51: #{tpu_custom_call.1} parent=47 // pred_region
          %s652 = ssub.s32 16, 16
          %653 = vsyncadd %s645, %s652
          %s654 = sadd.s32 %s28, %s27
          %s655 = smul.addr %s654, 16
          %s656 = scalar_lea.hbm %s7, %s655
          %s658 = sshll.u32 %s647, 4
          %s659 = int_to_ptr.vmem [resolvable:$true] %s658
          %661 = dma.vmem_to_hbm [thread:$0]  %s659, 16, %s656, %s645
        $region52: #{tpu_custom_call.1} parent=47 // pred_fallthru
          _
      $region48: #{tpu_custom_call.1} parent=5 // pred_fallthru
        _
      %p662 = scmp.le.s32.totalorder 2, %s18
      // Predicated region
      $region53: #{tpu_custom_call.1} parent=5 // pred_check
        %p663 = pneg %p662
      $region54: #{tpu_custom_call.1} parent=5 // pred_check_branch
        %665 = sbr.rel (%p663) target = $region56
      $region55: #{tpu_custom_call.1} parent=5 // pred_region
        %s666 = ssub.s32 %s18, 2
        // Predicated region
        $region57: #{tpu_custom_call.1} parent=55 // pred_check
          %p667 = pneg %p213
        $region58: #{tpu_custom_call.1} parent=55 // pred_check_branch
          %669 = sbr.rel (%p667) target = $region60
        $region59: #{tpu_custom_call.1} parent=55 // pred_region
          %s670 = sand.u32 %s198, 1
          %s671 = scalar_lea.sflag [#allocation4], %s670
          %s672 = sand.u32 %s198, 1
          %s673 = scalar_lea.vmem [#allocation3], %s672
          %674 = dma.done %s671, 16
        $region60: #{tpu_custom_call.1} parent=55 // pred_fallthru
          _
      $region56: #{tpu_custom_call.1} parent=5 // pred_fallthru
        _
    $region6: #{tpu_custom_call.1} parent=1 // loop_footer
      %s22 = sadd.s32 1, %s18
    $region7: #{tpu_custom_call.1} parent=1 // loop_footer_branch
      %17 = sbr.rel target = $region3
    $region8: #{tpu_custom_call.1} parent=1 // loop_exit
      _
    %675 = vsyncpa [#allocation4], 1
    %s676 = scalar_lea.sflag [#allocation4], 1
    %677 = vsyncpa %s676, 1

</llo_original>
